<compile_context>
chip_gen: v7x
topology: tpu7x:2x2x1
jax: 0.10.0
libtpu: 0.0.40
codegen_flags: <defaults>
</compile_context>

<pallas_src>
import jax
import jax.numpy as jnp
from jax.experimental import pallas as pl
from jax.experimental.pallas import tpu as pltpu


def conv1x1_pad1_sub_kernel(x_ref, y_ref, w_ref, b_ref, o_ref):
    """o = W @ pad(x) + b - y for one batch element (spatial dims flattened).

    x_ref : VMEM (1, Cin,  HW)   zero-padded input, spatial dims flattened
    y_ref : VMEM (1, Cout, HW)   tensor to subtract
    w_ref : VMEM (Cout, Cin)     1x1 conv weights
    b_ref : VMEM (Cout, 1)       conv bias (column vector)
    o_ref : VMEM (1, Cout, HW)   output
    """
    cin = x_ref.shape[1]
    # Start from (bias - y): bias column broadcasts across the lane dim.
    acc = b_ref[...] - y_ref[0]                              # (Cout, HW)
    # Channel contraction: Cin dense broadcast-FMAs on the VPU.
    for c in range(cin):
        acc = acc + w_ref[:, c:c + 1] * x_ref[0, c:c + 1, :]  # (Cout,1)*(1,HW)
    o_ref[0] = acc


@jax.jit
def conv1x1_pad1_sub(x, weight, bias, y):
    """Equivalent of: Conv2d(Cin, Cout, 1, stride=1, padding=1)(x) - y.

    x:      (N, Cin, H, W)
    weight: (Cout, Cin)  (1x1 conv kernel squeezed)
    bias:   (Cout,)
    y:      (N, Cout, H+2, W+2)
    returns (N, Cout, H+2, W+2) float32
    """
    N, Cin, H, W = x.shape
    Cout = weight.shape[0]
    Ho, Wo = H + 2, W + 2
    HW = Ho * Wo
    assert y.shape == (N, Cout, Ho, Wo)

    # padding=1 folded into the wrapper (few KB); flatten spatial dims so the
    # kernel's last dim is lane-dense (HW = 324 instead of 18).
    x_flat = jnp.pad(x.astype(jnp.float32),
                     ((0, 0), (0, 0), (1, 1), (1, 1))).reshape(N, Cin, HW)
    y_flat = y.astype(jnp.float32).reshape(N, Cout, HW)
    w2 = weight.astype(jnp.float32).reshape(Cout, Cin)
    b2 = bias.astype(jnp.float32).reshape(Cout, 1)

    out_flat = pl.pallas_call(
        conv1x1_pad1_sub_kernel,
        out_shape=jax.ShapeDtypeStruct((N, Cout, HW), jnp.float32),
        grid=(N,),
        in_specs=[
            pl.BlockSpec((1, Cin, HW), lambda n: (n, 0, 0)),    # x (padded)
            pl.BlockSpec((1, Cout, HW), lambda n: (n, 0, 0)),   # y
            pl.BlockSpec((Cout, Cin), lambda n: (0, 0)),        # weight
            pl.BlockSpec((Cout, 1), lambda n: (0, 0)),          # bias
        ],
        out_specs=pl.BlockSpec((1, Cout, HW), lambda n: (n, 0, 0)),
        input_output_aliases={1: 0},   # reuse y's buffer for the output
        compiler_params=pltpu.CompilerParams(
            dimension_semantics=("parallel",)),
    )(x_flat, y_flat, w2, b2)

    return out_flat.reshape(N, Cout, Ho, Wo)


if __name__ == "__main__":
    key = jax.random.PRNGKey(0)
    k_x, k_y, k_w, k_b = jax.random.split(key, 4)

    N, Cin, H, W = 1, 3, 16, 16
    Cout = 8
    Ho, Wo = H + 2, W + 2

    x = jax.random.normal(k_x, (N, Cin, H, W), dtype=jnp.float32)
    # Conv2d(3, 8, 1, padding=1): (N,3,H,W) -> (N,8,H+2,W+2); y must match.
    y = jax.random.normal(k_y, (N, Cout, Ho, Wo), dtype=jnp.float32)

    # Conv2d(3, 8, 1) parameter shapes: weight (Cout, Cin, 1, 1) -> (Cout, Cin)
    bound = 1.0 / (Cin ** 0.5)
    weight = jax.random.uniform(k_w, (Cout, Cin), jnp.float32, -bound, bound)
    bias = jax.random.uniform(k_b, (Cout,), jnp.float32, -bound, bound)

    # Plain-JAX reference (computed before the kernel call, since the kernel
    # aliases its internal copy of y to the output).
    ref = (
        jnp.einsum("oc,nchw->nohw", weight,
                   jnp.pad(x, ((0, 0), (0, 0), (1, 1), (1, 1))))
        + bias[None, :, None, None]
        - y
    )

    out = conv1x1_pad1_sub(x, weight, bias, y)
    jax.block_until_ready(out)

    assert out.shape == (N, Cout, Ho, Wo)
    assert bool(jnp.allclose(out, ref, atol=1e-5, rtol=1e-5))

    print("KERNEL_OK")
</pallas_src>

<mosaic_0001>
module attributes {stable_mosaic.version = 11 : i64} {
  func.func @conv1x1_pad1_sub_kernel(%arg0: i32, %arg1: memref<1x3x324xf32, #tpu.memory_space<vmem>>, %arg2: memref<1x8x324xf32, #tpu.memory_space<vmem>>, %arg3: memref<8x3xf32, #tpu.memory_space<vmem>>, %arg4: memref<8x1xf32, #tpu.memory_space<vmem>>, %arg5: memref<1x8x324xf32, #tpu.memory_space<vmem>>) attributes {dimension_semantics = [#tpu.dimension_semantics<parallel>], iteration_bounds = array<i64: 1>, scalar_prefetch = 0 : i64, scratch_operands = 0 : i64, tpu.core_type = #tpu.core_type<tc>, window_params = [{transform_indices = @transform_0, window_bounds = array<i64: 1, 3, 324>}, {transform_indices = @transform_1, window_bounds = array<i64: 1, 8, 324>}, {pipeline_mode = #tpu.pipeline_mode<synchronous>, transform_indices = @transform_2, window_bounds = array<i64: 8, 3>}, {pipeline_mode = #tpu.pipeline_mode<synchronous>, transform_indices = @transform_3, window_bounds = array<i64: 8, 1>}, {transform_indices = @transform_4, window_bounds = array<i64: 1, 8, 324>}]} {
    %c0 = arith.constant 0 : index
    %c0_0 = arith.constant 0 : index
    %0 = vector.load %arg4[%c0, %c0_0] : memref<8x1xf32, #tpu.memory_space<vmem>>, vector<8x1xf32>
    %c0_1 = arith.constant 0 : index
    %c0_2 = arith.constant 0 : index
    %c0_3 = arith.constant 0 : index
    %1 = vector.load %arg2[%c0_1, %c0_2, %c0_3] : memref<1x8x324xf32, #tpu.memory_space<vmem>>, vector<1x8x324xf32>
    %2 = vector.shape_cast %1 : vector<1x8x324xf32> to vector<8x324xf32>
    %3 = vector.broadcast %0 : vector<8x1xf32> to vector<8x324xf32>
    %4 = arith.subf %3, %2 : vector<8x324xf32>
    %c0_4 = arith.constant 0 : index
    %c0_5 = arith.constant 0 : index
    %5 = vector.load %arg3[%c0_4, %c0_5] : memref<8x3xf32, #tpu.memory_space<vmem>>, vector<8x1xf32>
    %c0_6 = arith.constant 0 : index
    %c0_7 = arith.constant 0 : index
    %c0_8 = arith.constant 0 : index
    %6 = vector.load %arg1[%c0_6, %c0_7, %c0_8] : memref<1x3x324xf32, #tpu.memory_space<vmem>>, vector<1x1x324xf32>
    %7 = vector.shape_cast %6 : vector<1x1x324xf32> to vector<1x324xf32>
    %8 = vector.broadcast %5 : vector<8x1xf32> to vector<8x324xf32>
    %9 = vector.broadcast %7 : vector<1x324xf32> to vector<8x324xf32>
    %10 = arith.mulf %8, %9 : vector<8x324xf32>
    %11 = arith.addf %4, %10 : vector<8x324xf32>
    %c0_9 = arith.constant 0 : index
    %c1 = arith.constant 1 : index
    %12 = vector.load %arg3[%c0_9, %c1] : memref<8x3xf32, #tpu.memory_space<vmem>>, vector<8x1xf32>
    %c0_10 = arith.constant 0 : index
    %c1_11 = arith.constant 1 : index
    %c0_12 = arith.constant 0 : index
    %13 = vector.load %arg1[%c0_10, %c1_11, %c0_12] : memref<1x3x324xf32, #tpu.memory_space<vmem>>, vector<1x1x324xf32>
    %14 = vector.shape_cast %13 : vector<1x1x324xf32> to vector<1x324xf32>
    %15 = vector.broadcast %12 : vector<8x1xf32> to vector<8x324xf32>
    %16 = vector.broadcast %14 : vector<1x324xf32> to vector<8x324xf32>
    %17 = arith.mulf %15, %16 : vector<8x324xf32>
    %18 = arith.addf %11, %17 : vector<8x324xf32>
    %c0_13 = arith.constant 0 : index
    %c2 = arith.constant 2 : index
    %19 = vector.load %arg3[%c0_13, %c2] : memref<8x3xf32, #tpu.memory_space<vmem>>, vector<8x1xf32>
    %c0_14 = arith.constant 0 : index
    %c2_15 = arith.constant 2 : index
    %c0_16 = arith.constant 0 : index
    %20 = vector.load %arg1[%c0_14, %c2_15, %c0_16] : memref<1x3x324xf32, #tpu.memory_space<vmem>>, vector<1x1x324xf32>
    %21 = vector.shape_cast %20 : vector<1x1x324xf32> to vector<1x324xf32>
    %22 = vector.broadcast %19 : vector<8x1xf32> to vector<8x324xf32>
    %23 = vector.broadcast %21 : vector<1x324xf32> to vector<8x324xf32>
    %24 = arith.mulf %22, %23 : vector<8x324xf32>
    %25 = arith.addf %18, %24 : vector<8x324xf32>
    %c0_17 = arith.constant 0 : index
    %c0_18 = arith.constant 0 : index
    %c0_19 = arith.constant 0 : index
    %26 = vector.load %arg5[%c0_17, %c0_18, %c0_19] : memref<1x8x324xf32, #tpu.memory_space<vmem>>, vector<1x8x324xf32>
    %27 = vector.shape_cast %26 : vector<1x8x324xf32> to vector<8x324xf32>
    %28 = vector.shape_cast %25 : vector<8x324xf32> to vector<1x8x324xf32>
    tpu.vector_store %arg5[%c0_17, %c0_18, %c0_19], %28 {strides = array<i32>} : memref<1x8x324xf32, #tpu.memory_space<vmem>>, vector<1x8x324xf32>,
    return
  }
  func.func @transform_0(%arg0: i32) -> (i32, i32, i32) {
    %c0_i32 = arith.constant 0 : i32
    %c0_i32_0 = arith.constant 0 : i32
    %c0_i32_1 = arith.constant 0 : i32
    return %arg0, %c0_i32, %c0_i32_0 : i32, i32, i32
  }
  func.func @transform_1(%arg0: i32) -> (i32, i32, i32) {
    %c0_i32 = arith.constant 0 : i32
    %c0_i32_0 = arith.constant 0 : i32
    %c0_i32_1 = arith.constant 0 : i32
    return %arg0, %c0_i32, %c0_i32_0 : i32, i32, i32
  }
  func.func @transform_2(%arg0: i32) -> (i32, i32) {
    %c0_i32 = arith.constant 0 : i32
    %c0_i32_0 = arith.constant 0 : i32
    %c0_i32_1 = arith.constant 0 : i32
    return %c0_i32, %c0_i32_0 : i32, i32
  }
  func.func @transform_3(%arg0: i32) -> (i32, i32) {
    %c0_i32 = arith.constant 0 : i32
    %c0_i32_0 = arith.constant 0 : i32
    %c0_i32_1 = arith.constant 0 : i32
    return %c0_i32, %c0_i32_0 : i32, i32
  }
  func.func @transform_4(%arg0: i32) -> (i32, i32, i32) {
    %c0_i32 = arith.constant 0 : i32
    %c0_i32_0 = arith.constant 0 : i32
    %c0_i32_1 = arith.constant 0 : i32
    return %arg0, %c0_i32, %c0_i32_0 : i32, i32, i32
  }
}

</mosaic_0001>

<llo_original>
// kernel: conv1x1_pad1_sub.1
$region0: #{conv1x1_pad1_sub.1}
  #allocation0 [shape = 'u32[]', space=smem, size = 0x4, offset = 0x4, fixed_abs, tag = 'smem constant byte address 0x4 - core index']
  #allocation1 [shape = 'u32[144,128]{1,0:T(1,128)}', space=vmem, size = 0x12000, scoped, tag = 'internal scratch']
  %s0 = inlined_call_operand.vmem [shape: f32[1,3,324], index: 0, kind: input, shape index: {}]
  %s1 = inlined_call_operand.vmem [shape: f32[1,8,324], index: 1, kind: input, shape index: {}, may-alias: {1,4}]
  %s2 = inlined_call_operand.vmem [shape: f32[8,3], index: 2, kind: input, shape index: {}]
  %s3 = inlined_call_operand.vmem [shape: f32[8,1], index: 3, kind: input, shape index: {}]
  %s4 = inlined_call_operand.vmem [shape: f32[1,8,324], index: 4, kind: output, shape index: {}, may-alias: {1,4}]
  %s5 = sld [smem:[#allocation0]]
  $region26: #{conv1x1_pad1_sub.1} parent=0
    _
  %s7 = ssub.s32 1, %s5
  %s8 = scalar_select 0, %s7, %s5
  // Predicated region
  $region2: #{conv1x1_pad1_sub.1} parent=0 // pred_check
    _
  $region3: #{conv1x1_pad1_sub.1} parent=0 // pred_check_branch
    %10 = sbr.rel (0) target = $region5
  $region4: #{conv1x1_pad1_sub.1} parent=0 // pred_region
    _
  $region5: #{conv1x1_pad1_sub.1} parent=0 // pred_fallthru
    _
  // Predicated region
  $region6: #{conv1x1_pad1_sub.1} parent=0 // pred_check
    _
  $region7: #{conv1x1_pad1_sub.1} parent=0 // pred_check_branch
    %12 = sbr.rel (0) target = $region9
  $region8: #{conv1x1_pad1_sub.1} parent=0 // pred_region
    _
  $region9: #{conv1x1_pad1_sub.1} parent=0 // pred_fallthru
    _
  // Predicated region
  $region10: #{conv1x1_pad1_sub.1} parent=0 // pred_check
    _
  $region11: #{conv1x1_pad1_sub.1} parent=0 // pred_check_branch
    %14 = sbr.rel (0) target = $region13
  $region12: #{conv1x1_pad1_sub.1} parent=0 // pred_region
    _
  $region13: #{conv1x1_pad1_sub.1} parent=0 // pred_fallthru
    _
  // Predicated region
  $region14: #{conv1x1_pad1_sub.1} parent=0 // pred_check
    _
  $region15: #{conv1x1_pad1_sub.1} parent=0 // pred_check_branch
    %16 = sbr.rel (0) target = $region17
  $region16: #{conv1x1_pad1_sub.1} parent=0 // pred_region
    _
  $region17: #{conv1x1_pad1_sub.1} parent=0 // pred_fallthru
    _
  %v17 = vld [vmem:[%s3] sm:$0xff]
  %v18 = vld [vmem:[%s1] sm:$0xff]
  %v19 = vld [vmem:[%s1 + $0x8] sm:$0xff]
  %v20 = vld [vmem:[%s1 + $0x10] sm:$0xff]
  %22 = vset.pattern.permute.xlu0 0
  %23 = vperm.xlu0 %22, %v17
  %v24 = vpop.permute.xlu0 %23
  %v26 = vsub.f32 %v24, %v18
  %v27 = vsub.f32 %v24, %v19
  %v28 = vsub.f32 %v24, %v20
  %v29 = vld [vmem:[%s2] sm:$0xff]
  %v30 = vld [vmem:[%s0] ss:$4 sm:$0x7]
  %32 = vset.pattern.permute.xlu0 0
  %33 = vperm.xlu0 %32, %v29
  %v34 = vpop.permute.xlu0 %33
  %v37 = vlaneseq
  %v38 = vshrl.u32 %v37, 7
  %v39 = vsub.s32 0, %v38
  %v40 = vrot.slane %v30, %v39
  %v41 = vlaneseq
  %v42 = vshrl.u32 %v41, 7
  %v43 = vsub.s32 1, %v42
  %v44 = vrot.slane %v30, %v43
  %v45 = vlaneseq
  %v46 = vshrl.u32 %v45, 7
  %v47 = vsub.s32 2, %v46
  %v48 = vrot.slane %v30, %v47
  %v52 = vmul.f32 %v34, %v40
  %v53 = vmul.f32 %v34, %v44
  %v54 = vmul.f32 %v34, %v48
  %v55 = vadd.f32 %v26, %v52
  %v56 = vadd.f32 %v27, %v53
  %v57 = vadd.f32 %v28, %v54
  %s58 = scalar_lea.vmem %s0, 1
  %v59 = vld [vmem:[%s58] ss:$4 sm:$0x7]
  %60 = vset.pattern.permute.xlu0 1
  %61 = vperm.xlu0 %60, %v29
  %v62 = vpop.permute.xlu0 %61
  %v65 = vlaneseq
  %v66 = vshrl.u32 %v65, 7
  %v67 = vsub.s32 0, %v66
  %v68 = vrot.slane %v59, %v67
  %v69 = vlaneseq
  %v70 = vshrl.u32 %v69, 7
  %v71 = vsub.s32 1, %v70
  %v72 = vrot.slane %v59, %v71
  %v73 = vlaneseq
  %v74 = vshrl.u32 %v73, 7
  %v75 = vsub.s32 2, %v74
  %v76 = vrot.slane %v59, %v75
  %v80 = vmul.f32 %v62, %v68
  %v81 = vmul.f32 %v62, %v72
  %v82 = vmul.f32 %v62, %v76
  %v83 = vadd.f32 %v55, %v80
  %v84 = vadd.f32 %v56, %v81
  %v85 = vadd.f32 %v57, %v82
  %s86 = scalar_lea.vmem %s0, 2
  %v87 = vld [vmem:[%s86] ss:$4 sm:$0x7]
  %88 = vset.pattern.permute.xlu0 2
  %89 = vperm.xlu0 %88, %v29
  %v90 = vpop.permute.xlu0 %89
  %v93 = vlaneseq
  %v94 = vshrl.u32 %v93, 7
  %v95 = vsub.s32 0, %v94
  %v96 = vrot.slane %v87, %v95
  %v97 = vlaneseq
  %v98 = vshrl.u32 %v97, 7
  %v99 = vsub.s32 1, %v98
  %v100 = vrot.slane %v87, %v99
  %v101 = vlaneseq
  %v102 = vshrl.u32 %v101, 7
  %v103 = vsub.s32 2, %v102
  %v104 = vrot.slane %v87, %v103
  %v108 = vmul.f32 %v90, %v96
  %v109 = vmul.f32 %v90, %v100
  %v110 = vmul.f32 %v90, %v104
  %v111 = vadd.f32 %v83, %v108
  %v112 = vadd.f32 %v84, %v109
  %v113 = vadd.f32 %v85, %v110
  %114 = vst [vmem:[%s4] sm:$0xff] %v111
  %115 = vst [vmem:[%s4 + $0x8] sm:$0xff] %v112
  %vm116 = vcmask 556032
  %117 = vst.msk [vmem:[%s4 + $0x10] sm:$0xff] %vm116, %v113
  // Predicated region
  $region18: #{conv1x1_pad1_sub.1} parent=0 // pred_check
    _
  $region19: #{conv1x1_pad1_sub.1} parent=0 // pred_check_branch
    %119 = sbr.rel (0) target = $region21
  $region20: #{conv1x1_pad1_sub.1} parent=0 // pred_region
    _
  $region21: #{conv1x1_pad1_sub.1} parent=0 // pred_fallthru
    _
  // Predicated region
  $region22: #{conv1x1_pad1_sub.1} parent=0 // pred_check
    _
  $region23: #{conv1x1_pad1_sub.1} parent=0 // pred_check_branch
    %121 = sbr.rel (0) target = $region25
  $region24: #{conv1x1_pad1_sub.1} parent=0 // pred_region
    _
  $region25: #{conv1x1_pad1_sub.1} parent=0 // pred_fallthru
    _

</llo_original>
